<compile_context>
chip_gen: v7x
topology: tpu7x:2x2x1
jax: 0.10.0
libtpu: 0.0.40
codegen_flags: <defaults>
</compile_context>

<pallas_src>
import numpy as np
import jax
import jax.numpy as jnp
from jax.experimental import pallas as pl
from jax.experimental.pallas import tpu as pltpu


def _gated_masked_conv_kernel(vp_ref, hp_ref, hin_ref,
                              wv_ref, bv_ref, wh_ref, bh_ref,
                              wh1_ref, bh1_ref,
                              vout_ref, hout_ref):
    C = vout_ref.shape[0]

    # Fused (vertical masked conv + conv_vert_to_horiz 1x1):
    #   (4C, 6C) @ (6C, TM) -> (4C, TM); rows [0,2C) = v_feat, rows [2C,4C) =
    #   Wvh @ v_feat + bvh (bias already folded into bv_ref rows [2C,4C)).
    vfull = jnp.dot(wv_ref[...], vp_ref[...],
                    preferred_element_type=jnp.float32) + bv_ref[...]
    v_feat = vfull[:2 * C]
    h_from_v = vfull[2 * C:]

    # vertical stack gating
    vout_ref[...] = (jnp.tanh(v_feat[:C]) *
                     jax.nn.sigmoid(v_feat[C:])).astype(vout_ref.dtype)

    # horizontal masked 1x3 conv (2 live taps) + vertical contribution
    h_feat = jnp.dot(wh_ref[...], hp_ref[...],
                     preferred_element_type=jnp.float32) + bh_ref[...] + h_from_v

    # horizontal gating
    h_gated = jnp.tanh(h_feat[:C]) * jax.nn.sigmoid(h_feat[C:])

    # final 1x1 conv + residual
    h_out = jnp.dot(wh1_ref[...], h_gated,
                    preferred_element_type=jnp.float32) + bh1_ref[...] + hin_ref[...]
    hout_ref[...] = h_out.astype(hout_ref.dtype)


def gated_masked_conv(v_stack, h_stack, tp):
    """v_stack, h_stack: NCHW float32. tp: torch-shaped (OIHW) params.
    Returns (v_out, h_out) in NCHW."""
    N, C, H, W = v_stack.shape
    M = N * H * W
    C2 = 2 * C

    # ---- wrapper-side layout glue: transposed im2col (channels x pixels) ----
    def to_cm(x):  # (N, C, H, W) -> (C, N*H*W)
        return jnp.transpose(x, (1, 0, 2, 3)).reshape(C, M)

    # vertical masked 3x3: live taps are dy in {0,1}, dx in {0,1,2}
    v_pad = jnp.pad(v_stack, ((0, 0), (0, 0), (1, 1), (1, 1)))
    v_patches = jnp.concatenate(
        [to_cm(v_pad[:, :, dy:dy + H, dx:dx + W])
         for dy in range(2) for dx in range(3)], axis=0)            # (6C, M)

    # horizontal masked 1x3: live taps are dx in {0,1}
    h_pad = jnp.pad(h_stack, ((0, 0), (0, 0), (0, 0), (1, 1)))
    h_patches = jnp.concatenate(
        [to_cm(h_pad[:, :, :, dx:dx + W]) for dx in range(2)], axis=0)  # (2C, M)

    h_in = to_cm(h_stack)                                            # (C, M)

    # ---- weight packing (mask-aware, wvh fused into the vertical conv) ----
    wv = tp['w_vert']                       # (2C, C, 3, 3), masked (row 2 = 0)
    W_v = jnp.concatenate([wv[:, :, dy, dx]
                           for dy in range(2) for dx in range(3)], axis=1)  # (2C, 6C)
    Wvh = tp['w_vh'][:, :, 0, 0]            # (2C, 2C)
    wv_comb = jnp.concatenate([W_v, Wvh @ W_v], axis=0)              # (4C, 6C)
    bv_comb = jnp.concatenate(
        [tp['b_vert'], Wvh @ tp['b_vert'] + tp['b_vh']]).reshape(4 * C, 1)

    whz = tp['w_horiz']                     # (2C, C, 1, 3), masked (col 2 = 0)
    W_h = jnp.concatenate([whz[:, :, 0, dx] for dx in range(2)], axis=1)  # (2C, 2C)
    bh = tp['b_horiz'].reshape(C2, 1)
    Wh1 = tp['w_h1'][:, :, 0, 0]            # (C, C)
    bh1 = tp['b_h1'].reshape(C, 1)

    # ---- grid over the pixel (lane) axis ----
    tm = 256 if (M % 256 == 0 and M > 256) else M
    grid = (M // tm,)

    def data_spec(rows):
        return pl.BlockSpec((rows, tm), lambda i: (0, i))

    def full_spec(arr):
        shape = tuple(int(s) for s in arr.shape)
        return pl.BlockSpec(shape, lambda i, _n=len(shape): (0,) * _n)

    v_out_t, h_out_t = pl.pallas_call(
        _gated_masked_conv_kernel,
        out_shape=(jax.ShapeDtypeStruct((C, M), jnp.float32),
                   jax.ShapeDtypeStruct((C, M), jnp.float32)),
        grid=grid,
        in_specs=[
            data_spec(6 * C), data_spec(C2), data_spec(C),
            full_spec(wv_comb), full_spec(bv_comb),
            full_spec(W_h), full_spec(bh),
            full_spec(Wh1), full_spec(bh1),
        ],
        out_specs=(data_spec(C), data_spec(C)),
        compiler_params=pltpu.CompilerParams(
            dimension_semantics=("parallel",)),
    )(v_patches, h_patches, h_in,
      wv_comb, bv_comb, W_h, bh, Wh1, bh1)

    v_out = jnp.transpose(v_out_t.reshape(C, N, H, W), (1, 0, 2, 3))
    h_out = jnp.transpose(h_out_t.reshape(C, N, H, W), (1, 0, 2, 3))
    return v_out, h_out


def init_params(key, C):
    """Deterministic init matching the PyTorch module's parameter shapes
    (Conv2d default-style uniform init), with the 'B' masks pre-applied."""
    C2 = 2 * C
    ks = jax.random.split(key, 8)

    def uinit(k, shape, fan_in):
        bound = 1.0 / np.sqrt(fan_in)
        return jax.random.uniform(k, shape, jnp.float32, -bound, bound)

    # PyTorch OIHW weight shapes
    w_vert = uinit(ks[0], (C2, C, 3, 3), C * 9)
    b_vert = uinit(ks[1], (C2,), C * 9)
    w_horiz = uinit(ks[2], (C2, C, 1, 3), C * 3)
    b_horiz = uinit(ks[3], (C2,), C * 3)
    w_vh = uinit(ks[4], (C2, C2, 1, 1), C2)
    b_vh = uinit(ks[5], (C2,), C2)
    w_h1 = uinit(ks[6], (C, C, 1, 1), C)
    b_h1 = uinit(ks[7], (C,), C)

    # 'B'-type masks (kernel_size=3): vertical keeps rows 0,1; horizontal keeps cols 0,1
    mask_v = np.zeros((3, 3), np.float32); mask_v[:2, :] = 1.0
    mask_h = np.zeros((1, 3), np.float32); mask_h[:, :2] = 1.0
    w_vert = w_vert * mask_v[None, None]
    w_horiz = w_horiz * mask_h[None, None]

    return dict(w_vert=w_vert, b_vert=b_vert, w_horiz=w_horiz, b_horiz=b_horiz,
                w_vh=w_vh, b_vh=b_vh, w_h1=w_h1, b_h1=b_h1)


def ref_forward(v_stack, h_stack, tp):
    """Pure-JAX (XLA) reference mirroring the PyTorch forward, NCHW/OIHW."""
    def conv(x, w, b, pad):
        y = jax.lax.conv_general_dilated(
            x, w, (1, 1), pad, dimension_numbers=('NCHW', 'OIHW', 'NCHW'))
        return y + b.reshape(1, -1, 1, 1)

    C = v_stack.shape[1]
    v_feat = conv(v_stack, tp['w_vert'], tp['b_vert'], ((1, 1), (1, 1)))
    v_out = jnp.tanh(v_feat[:, :C]) * jax.nn.sigmoid(v_feat[:, C:])
    h_feat = conv(h_stack, tp['w_horiz'], tp['b_horiz'], ((0, 0), (1, 1)))
    h_feat = h_feat + conv(v_feat, tp['w_vh'], tp['b_vh'], ((0, 0), (0, 0)))
    h_g = jnp.tanh(h_feat[:, :C]) * jax.nn.sigmoid(h_feat[:, C:])
    h_out = conv(h_g, tp['w_h1'], tp['b_h1'], ((0, 0), (0, 0))) + h_stack
    return v_out, h_out


if __name__ == "__main__":
    key = jax.random.PRNGKey(0)
    k1, k2, k3 = jax.random.split(key, 3)

    N, C, H, W = 2, 4, 16, 16  # NCHW, matching the PyTorch module's convention
    v_stack = jax.random.normal(k1, (N, C, H, W), jnp.float32)
    h_stack = jax.random.normal(k2, (N, C, H, W), jnp.float32)
    params = init_params(k3, C)

    run = jax.jit(lambda v, h: gated_masked_conv(v, h, params))
    v_out, h_out = run(v_stack, h_stack)
    jax.block_until_ready((v_out, h_out))

    v_ref, h_ref = ref_forward(v_stack, h_stack, params)
    assert v_out.shape == (N, C, H, W) and h_out.shape == (N, C, H, W)
    assert jnp.allclose(v_out, v_ref, atol=1e-4, rtol=1e-4), "v_stack_out mismatch"
    assert jnp.allclose(h_out, h_ref, atol=1e-4, rtol=1e-4), "h_stack_out mismatch"

    print("KERNEL_OK")
</pallas_src>

<mosaic_0001>
module attributes {stable_mosaic.version = 11 : i64} {
  func.func @_gated_masked_conv_kernel(%arg0: i32, %arg1: memref<24x256xf32, #tpu.memory_space<vmem>>, %arg2: memref<8x256xf32, #tpu.memory_space<vmem>>, %arg3: memref<4x256xf32, #tpu.memory_space<vmem>>, %arg4: memref<16x24xf32, #tpu.memory_space<vmem>>, %arg5: memref<16x1xf32, #tpu.memory_space<vmem>>, %arg6: memref<8x8xf32, #tpu.memory_space<vmem>>, %arg7: memref<8x1xf32, #tpu.memory_space<vmem>>, %arg8: memref<4x4xf32, #tpu.memory_space<vmem>>, %arg9: memref<4x1xf32, #tpu.memory_space<vmem>>, %arg10: memref<4x256xf32, #tpu.memory_space<vmem>>, %arg11: memref<4x256xf32, #tpu.memory_space<vmem>>) attributes {dimension_semantics = [#tpu.dimension_semantics<parallel>], iteration_bounds = array<i64: 2>, scalar_prefetch = 0 : i64, scratch_operands = 0 : i64, tpu.core_type = #tpu.core_type<tc>, window_params = [{transform_indices = @transform_0, window_bounds = array<i64: 24, 256>}, {transform_indices = @transform_1, window_bounds = array<i64: 8, 256>}, {transform_indices = @transform_2, window_bounds = array<i64: 4, 256>}, {pipeline_mode = #tpu.pipeline_mode<synchronous>, transform_indices = @transform_3, window_bounds = array<i64: 16, 24>}, {pipeline_mode = #tpu.pipeline_mode<synchronous>, transform_indices = @transform_4, window_bounds = array<i64: 16, 1>}, {pipeline_mode = #tpu.pipeline_mode<synchronous>, transform_indices = @transform_5, window_bounds = array<i64: 8, 8>}, {pipeline_mode = #tpu.pipeline_mode<synchronous>, transform_indices = @transform_6, window_bounds = array<i64: 8, 1>}, {pipeline_mode = #tpu.pipeline_mode<synchronous>, transform_indices = @transform_7, window_bounds = array<i64: 4, 4>}, {pipeline_mode = #tpu.pipeline_mode<synchronous>, transform_indices = @transform_8, window_bounds = array<i64: 4, 1>}, {transform_indices = @transform_9, window_bounds = array<i64: 4, 256>}, {transform_indices = @transform_10, window_bounds = array<i64: 4, 256>}]} {
    %c0 = arith.constant 0 : index
    %c0_0 = arith.constant 0 : index
    %0 = vector.load %arg4[%c0, %c0_0] : memref<16x24xf32, #tpu.memory_space<vmem>>, vector<16x24xf32>
    %c0_1 = arith.constant 0 : index
    %c0_2 = arith.constant 0 : index
    %1 = vector.load %arg1[%c0_1, %c0_2] : memref<24x256xf32, #tpu.memory_space<vmem>>, vector<24x256xf32>
    %cst = arith.constant dense<0.000000e+00> : vector<16x256xf32>
    %2 = tpu.matmul %0, %1, %cst {dimension_numbers = #tpu.dot_dimension_numbers<[1], [0], [0], [1], [0, 0, 1, 1], [], []>} : vector<16x24xf32>, vector<24x256xf32>, vector<16x256xf32> -> vector<16x256xf32>
    %c0_3 = arith.constant 0 : index
    %c0_4 = arith.constant 0 : index
    %3 = vector.load %arg5[%c0_3, %c0_4] : memref<16x1xf32, #tpu.memory_space<vmem>>, vector<16x1xf32>
    %4 = vector.broadcast %3 : vector<16x1xf32> to vector<16x256xf32>
    %5 = arith.addf %2, %4 : vector<16x256xf32>
    %6 = vector.extract_strided_slice %5 {offsets = [0, 0], sizes = [8, 256], strides = [1, 1]} : vector<16x256xf32> to vector<8x256xf32>
    %7 = vector.extract_strided_slice %5 {offsets = [8, 0], sizes = [8, 256], strides = [1, 1]} : vector<16x256xf32> to vector<8x256xf32>
    %8 = vector.extract_strided_slice %6 {offsets = [0, 0], sizes = [4, 256], strides = [1, 1]} : vector<8x256xf32> to vector<4x256xf32>
    %9 = math.tanh %8 : vector<4x256xf32>
    %10 = vector.extract_strided_slice %6 {offsets = [4, 0], sizes = [4, 256], strides = [1, 1]} : vector<8x256xf32> to vector<4x256xf32>
    %11 = arith.negf %10 : vector<4x256xf32>
    %12 = math.exp %11 : vector<4x256xf32>
    %cst_5 = arith.constant 1.000000e+00 : f32
    %13 = vector.broadcast %cst_5 : f32 to vector<4x256xf32>
    %14 = arith.addf %13, %12 : vector<4x256xf32>
    %15 = arith.divf %13, %14 : vector<4x256xf32>
    %16 = arith.mulf %9, %15 : vector<4x256xf32>
    %c0_6 = arith.constant 0 : index
    %c0_7 = arith.constant 0 : index
    %17 = vector.load %arg10[%c0_6, %c0_7] : memref<4x256xf32, #tpu.memory_space<vmem>>, vector<4x256xf32>
    tpu.vector_store %arg10[%c0_6, %c0_7], %16 {strides = array<i32>} : memref<4x256xf32, #tpu.memory_space<vmem>>, vector<4x256xf32>,
    %c0_8 = arith.constant 0 : index
    %c0_9 = arith.constant 0 : index
    %18 = vector.load %arg6[%c0_8, %c0_9] : memref<8x8xf32, #tpu.memory_space<vmem>>, vector<8x8xf32>
    %c0_10 = arith.constant 0 : index
    %c0_11 = arith.constant 0 : index
    %19 = vector.load %arg2[%c0_10, %c0_11] : memref<8x256xf32, #tpu.memory_space<vmem>>, vector<8x256xf32>
    %cst_12 = arith.constant dense<0.000000e+00> : vector<8x256xf32>
    %20 = tpu.matmul %18, %19, %cst_12 {dimension_numbers = #tpu.dot_dimension_numbers<[1], [0], [0], [1], [0, 0, 1, 1], [], []>} : vector<8x8xf32>, vector<8x256xf32>, vector<8x256xf32> -> vector<8x256xf32>
    %c0_13 = arith.constant 0 : index
    %c0_14 = arith.constant 0 : index
    %21 = vector.load %arg7[%c0_13, %c0_14] : memref<8x1xf32, #tpu.memory_space<vmem>>, vector<8x1xf32>
    %22 = vector.broadcast %21 : vector<8x1xf32> to vector<8x256xf32>
    %23 = arith.addf %20, %22 : vector<8x256xf32>
    %24 = arith.addf %23, %7 : vector<8x256xf32>
    %25 = vector.extract_strided_slice %24 {offsets = [0, 0], sizes = [4, 256], strides = [1, 1]} : vector<8x256xf32> to vector<4x256xf32>
    %26 = math.tanh %25 : vector<4x256xf32>
    %27 = vector.extract_strided_slice %24 {offsets = [4, 0], sizes = [4, 256], strides = [1, 1]} : vector<8x256xf32> to vector<4x256xf32>
    %28 = arith.negf %27 : vector<4x256xf32>
    %29 = math.exp %28 : vector<4x256xf32>
    %cst_15 = arith.constant 1.000000e+00 : f32
    %30 = vector.broadcast %cst_15 : f32 to vector<4x256xf32>
    %31 = arith.addf %30, %29 : vector<4x256xf32>
    %32 = arith.divf %30, %31 : vector<4x256xf32>
    %33 = arith.mulf %26, %32 : vector<4x256xf32>
    %c0_16 = arith.constant 0 : index
    %c0_17 = arith.constant 0 : index
    %34 = vector.load %arg8[%c0_16, %c0_17] : memref<4x4xf32, #tpu.memory_space<vmem>>, vector<4x4xf32>
    %cst_18 = arith.constant dense<0.000000e+00> : vector<4x256xf32>
    %35 = tpu.matmul %34, %33, %cst_18 {dimension_numbers = #tpu.dot_dimension_numbers<[1], [0], [0], [1], [0, 0, 1, 1], [], []>} : vector<4x4xf32>, vector<4x256xf32>, vector<4x256xf32> -> vector<4x256xf32>
    %c0_19 = arith.constant 0 : index
    %c0_20 = arith.constant 0 : index
    %36 = vector.load %arg9[%c0_19, %c0_20] : memref<4x1xf32, #tpu.memory_space<vmem>>, vector<4x1xf32>
    %37 = vector.broadcast %36 : vector<4x1xf32> to vector<4x256xf32>
    %38 = arith.addf %35, %37 : vector<4x256xf32>
    %c0_21 = arith.constant 0 : index
    %c0_22 = arith.constant 0 : index
    %39 = vector.load %arg3[%c0_21, %c0_22] : memref<4x256xf32, #tpu.memory_space<vmem>>, vector<4x256xf32>
    %40 = arith.addf %38, %39 : vector<4x256xf32>
    %c0_23 = arith.constant 0 : index
    %c0_24 = arith.constant 0 : index
    %41 = vector.load %arg11[%c0_23, %c0_24] : memref<4x256xf32, #tpu.memory_space<vmem>>, vector<4x256xf32>
    tpu.vector_store %arg11[%c0_23, %c0_24], %40 {strides = array<i32>} : memref<4x256xf32, #tpu.memory_space<vmem>>, vector<4x256xf32>,
    return
  }
  func.func @transform_0(%arg0: i32) -> (i32, i32) {
    %c0_i32 = arith.constant 0 : i32
    %c0_i32_0 = arith.constant 0 : i32
    return %c0_i32, %arg0 : i32, i32
  }
  func.func @transform_1(%arg0: i32) -> (i32, i32) {
    %c0_i32 = arith.constant 0 : i32
    %c0_i32_0 = arith.constant 0 : i32
    return %c0_i32, %arg0 : i32, i32
  }
  func.func @transform_2(%arg0: i32) -> (i32, i32) {
    %c0_i32 = arith.constant 0 : i32
    %c0_i32_0 = arith.constant 0 : i32
    return %c0_i32, %arg0 : i32, i32
  }
  func.func @transform_3(%arg0: i32) -> (i32, i32) {
    %c0_i32 = arith.constant 0 : i32
    %c0_i32_0 = arith.constant 0 : i32
    %c0_i32_1 = arith.constant 0 : i32
    return %c0_i32, %c0_i32_0 : i32, i32
  }
  func.func @transform_4(%arg0: i32) -> (i32, i32) {
    %c0_i32 = arith.constant 0 : i32
    %c0_i32_0 = arith.constant 0 : i32
    %c0_i32_1 = arith.constant 0 : i32
    return %c0_i32, %c0_i32_0 : i32, i32
  }
  func.func @transform_5(%arg0: i32) -> (i32, i32) {
    %c0_i32 = arith.constant 0 : i32
    %c0_i32_0 = arith.constant 0 : i32
    %c0_i32_1 = arith.constant 0 : i32
    return %c0_i32, %c0_i32_0 : i32, i32
  }
  func.func @transform_6(%arg0: i32) -> (i32, i32) {
    %c0_i32 = arith.constant 0 : i32
    %c0_i32_0 = arith.constant 0 : i32
    %c0_i32_1 = arith.constant 0 : i32
    return %c0_i32, %c0_i32_0 : i32, i32
  }
  func.func @transform_7(%arg0: i32) -> (i32, i32) {
    %c0_i32 = arith.constant 0 : i32
    %c0_i32_0 = arith.constant 0 : i32
    %c0_i32_1 = arith.constant 0 : i32
    return %c0_i32, %c0_i32_0 : i32, i32
  }
  func.func @transform_8(%arg0: i32) -> (i32, i32) {
    %c0_i32 = arith.constant 0 : i32
    %c0_i32_0 = arith.constant 0 : i32
    %c0_i32_1 = arith.constant 0 : i32
    return %c0_i32, %c0_i32_0 : i32, i32
  }
  func.func @transform_9(%arg0: i32) -> (i32, i32) {
    %c0_i32 = arith.constant 0 : i32
    %c0_i32_0 = arith.constant 0 : i32
    return %c0_i32, %arg0 : i32, i32
  }
  func.func @transform_10(%arg0: i32) -> (i32, i32) {
    %c0_i32 = arith.constant 0 : i32
    %c0_i32_0 = arith.constant 0 : i32
    return %c0_i32, %arg0 : i32, i32
  }
}

</mosaic_0001>

<llo_original>
// kernel: _lambda_.1
$region0: #{_lambda_.1}
  #allocation0 [shape = 'u32[]', space=smem, size = 0x4, offset = 0x4, fixed_abs, tag = 'smem constant byte address 0x4 - core index']
  #allocation1 [shape = 'u32[144,128]{1,0:T(1,128)}', space=vmem, size = 0x12000, scoped, tag = 'internal scratch']
  %s0 = inlined_call_operand.vmem [shape: f32[24,512], index: 0, kind: input, shape index: {}]
  %s1 = inlined_call_operand.vmem [shape: f32[8,512], index: 1, kind: input, shape index: {}]
  %s2 = inlined_call_operand.vmem [shape: f32[4,512], index: 2, kind: input, shape index: {}]
  %s3 = inlined_call_operand.vmem [shape: f32[16,24], index: 3, kind: input, shape index: {}]
  %s4 = inlined_call_operand.vmem [shape: f32[16,1], index: 4, kind: input, shape index: {}]
  %s5 = inlined_call_operand.vmem [shape: f32[8,8], index: 5, kind: input, shape index: {}]
  %s6 = inlined_call_operand.vmem [shape: f32[8,1], index: 6, kind: input, shape index: {}]
  %s7 = inlined_call_operand.vmem [shape: f32[4,4], index: 7, kind: input, shape index: {}]
  %s8 = inlined_call_operand.vmem [shape: f32[4,1], index: 8, kind: input, shape index: {}]
  %s9 = inlined_call_operand.vmem [shape: f32[4,512], index: 9, kind: output, shape index: {0}]
  %s10 = inlined_call_operand.vmem [shape: f32[4,512], index: 10, kind: output, shape index: {1}]
  %11 = xla_tuple %s9, %s10
  %s12 = sld [smem:[#allocation0]]
  $region100: #{_lambda_.1} parent=0
    _
  %s14 = ssub.s32 1, %s12
  %s15 = scalar_select 0, %s14, %s12
  $region1: #{_lambda_.1} parent=0
    #allocation2 [shape = 'u8[49152]{0}', space=vmem, size = 0xc000, scoped, tag = 'input window, operand 0']
    loop: start=0, step=1, limit=4
    $region2: #{_lambda_.1} parent=1 // loop_pre_header
      _
    $region3: #{_lambda_.1} parent=1 // loop_header
      %s17 = sphi 0, %s21
      %p18 = scmp.ge.s32.totalorder %s17, 4
      %s27 = sphi 0, %s29
      %s30 = sphi 0, %s27
      %s31 = sphi 0, %s30
      %s47 = sphi 0, %s31
      %s53 = sphi 0, %s55
      %s56 = sphi 0, %s53
      %s57 = sphi 0, %s56
      %s73 = sphi 0, %s57
      %s79 = sphi 0, %s81
      %s82 = sphi 0, %s79
      %s83 = sphi 0, %s82
      %s99 = sphi 0, %s83
      %s103 = sphi 0, %s103
      %s105 = sphi 0, %s103
      %s106 = sphi 0, %s105
      %s120 = sphi 0, %s106
      %s124 = sphi 0, %s124
      %s126 = sphi 0, %s124
      %s127 = sphi 0, %s126
      %s141 = sphi 0, %s127
      %s145 = sphi 0, %s145
      %s147 = sphi 0, %s145
      %s148 = sphi 0, %s147
      %s162 = sphi 0, %s148
      %s166 = sphi 0, %s166
      %s168 = sphi 0, %s166
      %s169 = sphi 0, %s168
      %s183 = sphi 0, %s169
      %s187 = sphi 0, %s187
      %s189 = sphi 0, %s187
      %s190 = sphi 0, %s189
      %s204 = sphi 0, %s190
      %s208 = sphi 0, %s208
      %s210 = sphi 0, %s208
      %s211 = sphi 0, %s210
      %s225 = sphi 0, %s211
      %s231 = sphi 0, %s233
      %s234 = sphi 0, %s231
      %s235 = sphi 0, %s234
      %s251 = sphi 0, %s235
      %s257 = sphi 0, %s259
      %s260 = sphi 0, %s257
      %s261 = sphi 0, %s260
      %s277 = sphi 0, %s261
    $region4: #{_lambda_.1} parent=1 // loop_header_branch
      %20 = sbr.rel (%p18) target = $region8
    $region5: #{_lambda_.1} parent=1 // loop_body
      %s22 = ssub.s32 %s17, 1
      %s23 = ssub.s32 %s17, 2
      %s24 = sadd.s32 %s17, 1
      %s25 = ssub.s32 %s17, %s24
      %p26 = scmp.eq.s32.totalorder %s25, 0
      %s28 = sadd.s32 %s27, 1
      %s29 = scalar_select %p26, %s27, %s28
      %p32 = pneg %p26
      %p33 = scmp.eq.s32.totalorder %s17, 1
      %p34 = por %p32, %p33
      %p35 = scmp.ne.s32.totalorder %s27, %s30
      %p36 = scmp.eq.s32.totalorder %s17, 0
      %p37 = por %p35, %p36
      %p38 = scmp.ne.s32.totalorder %s27, %s30
      %p39 = scmp.eq.s32.totalorder %s22, 1
      %p40 = por %p38, %p39
      %p41 = scmp.ne.s32.totalorder %s30, %s31
      %p42 = scmp.eq.s32.totalorder %s22, 0
      %p43 = por %p41, %p42
      %p44 = scmp.ne.s32.totalorder %s30, %s31
      %p45 = scmp.eq.s32.totalorder %s23, 1
      %p46 = por %p44, %p45
      %p48 = scmp.ne.s32.totalorder %s31, %s47
      %p49 = scmp.eq.s32.totalorder %s23, 0
      %p50 = por %p48, %p49
      %s51 = ssub.s32 %s17, %s24
      %p52 = scmp.eq.s32.totalorder %s51, 0
      %s54 = sadd.s32 %s53, 1
      %s55 = scalar_select %p52, %s53, %s54
      %p58 = pneg %p52
      %p59 = scmp.eq.s32.totalorder %s17, 1
      %p60 = por %p58, %p59
      %p61 = scmp.ne.s32.totalorder %s53, %s56
      %p62 = scmp.eq.s32.totalorder %s17, 0
      %p63 = por %p61, %p62
      %p64 = scmp.ne.s32.totalorder %s53, %s56
      %p65 = scmp.eq.s32.totalorder %s22, 1
      %p66 = por %p64, %p65
      %p67 = scmp.ne.s32.totalorder %s56, %s57
      %p68 = scmp.eq.s32.totalorder %s22, 0
      %p69 = por %p67, %p68
      %p70 = scmp.ne.s32.totalorder %s56, %s57
      %p71 = scmp.eq.s32.totalorder %s23, 1
      %p72 = por %p70, %p71
      %p74 = scmp.ne.s32.totalorder %s57, %s73
      %p75 = scmp.eq.s32.totalorder %s23, 0
      %p76 = por %p74, %p75
      %s77 = ssub.s32 %s17, %s24
      %p78 = scmp.eq.s32.totalorder %s77, 0
      %s80 = sadd.s32 %s79, 1
      %s81 = scalar_select %p78, %s79, %s80
      %p84 = pneg %p78
      %p85 = scmp.eq.s32.totalorder %s17, 1
      %p86 = por %p84, %p85
      %p87 = scmp.ne.s32.totalorder %s79, %s82
      %p88 = scmp.eq.s32.totalorder %s17, 0
      %p89 = por %p87, %p88
      %p90 = scmp.ne.s32.totalorder %s79, %s82
      %p91 = scmp.eq.s32.totalorder %s22, 1
      %p92 = por %p90, %p91
      %p93 = scmp.ne.s32.totalorder %s82, %s83
      %p94 = scmp.eq.s32.totalorder %s22, 0
      %p95 = por %p93, %p94
      %p96 = scmp.ne.s32.totalorder %s82, %s83
      %p97 = scmp.eq.s32.totalorder %s23, 1
      %p98 = por %p96, %p97
      %p100 = scmp.ne.s32.totalorder %s83, %s99
      %p101 = scmp.eq.s32.totalorder %s23, 0
      %p102 = por %p100, %p101
      %s104 = sadd.s32 %s103, 1
      %p107 = scmp.eq.s32.totalorder %s17, 1
      %p108 = scmp.ne.s32.totalorder %s103, %s105
      %p109 = scmp.eq.s32.totalorder %s17, 0
      %p110 = por %p108, %p109
      %p111 = scmp.ne.s32.totalorder %s103, %s105
      %p112 = scmp.eq.s32.totalorder %s22, 1
      %p113 = por %p111, %p112
      %p114 = scmp.ne.s32.totalorder %s105, %s106
      %p115 = scmp.eq.s32.totalorder %s22, 0
      %p116 = por %p114, %p115
      %p117 = scmp.ne.s32.totalorder %s105, %s106
      %p118 = scmp.eq.s32.totalorder %s23, 1
      %p119 = por %p117, %p118
      %p121 = scmp.ne.s32.totalorder %s106, %s120
      %p122 = scmp.eq.s32.totalorder %s23, 0
      %p123 = por %p121, %p122
      %s125 = sadd.s32 %s124, 1
      %p128 = scmp.eq.s32.totalorder %s17, 1
      %p129 = scmp.ne.s32.totalorder %s124, %s126
      %p130 = scmp.eq.s32.totalorder %s17, 0
      %p131 = por %p129, %p130
      %p132 = scmp.ne.s32.totalorder %s124, %s126
      %p133 = scmp.eq.s32.totalorder %s22, 1
      %p134 = por %p132, %p133
      %p135 = scmp.ne.s32.totalorder %s126, %s127
      %p136 = scmp.eq.s32.totalorder %s22, 0
      %p137 = por %p135, %p136
      %p138 = scmp.ne.s32.totalorder %s126, %s127
      %p139 = scmp.eq.s32.totalorder %s23, 1
      %p140 = por %p138, %p139
      %p142 = scmp.ne.s32.totalorder %s127, %s141
      %p143 = scmp.eq.s32.totalorder %s23, 0
      %p144 = por %p142, %p143
      %s146 = sadd.s32 %s145, 1
      %p149 = scmp.eq.s32.totalorder %s17, 1
      %p150 = scmp.ne.s32.totalorder %s145, %s147
      %p151 = scmp.eq.s32.totalorder %s17, 0
      %p152 = por %p150, %p151
      %p153 = scmp.ne.s32.totalorder %s145, %s147
      %p154 = scmp.eq.s32.totalorder %s22, 1
      %p155 = por %p153, %p154
      %p156 = scmp.ne.s32.totalorder %s147, %s148
      %p157 = scmp.eq.s32.totalorder %s22, 0
      %p158 = por %p156, %p157
      %p159 = scmp.ne.s32.totalorder %s147, %s148
      %p160 = scmp.eq.s32.totalorder %s23, 1
      %p161 = por %p159, %p160
      %p163 = scmp.ne.s32.totalorder %s148, %s162
      %p164 = scmp.eq.s32.totalorder %s23, 0
      %p165 = por %p163, %p164
      %s167 = sadd.s32 %s166, 1
      %p170 = scmp.eq.s32.totalorder %s17, 1
      %p171 = scmp.ne.s32.totalorder %s166, %s168
      %p172 = scmp.eq.s32.totalorder %s17, 0
      %p173 = por %p171, %p172
      %p174 = scmp.ne.s32.totalorder %s166, %s168
      %p175 = scmp.eq.s32.totalorder %s22, 1
      %p176 = por %p174, %p175
      %p177 = scmp.ne.s32.totalorder %s168, %s169
      %p178 = scmp.eq.s32.totalorder %s22, 0
      %p179 = por %p177, %p178
      %p180 = scmp.ne.s32.totalorder %s168, %s169
      %p181 = scmp.eq.s32.totalorder %s23, 1
      %p182 = por %p180, %p181
      %p184 = scmp.ne.s32.totalorder %s169, %s183
      %p185 = scmp.eq.s32.totalorder %s23, 0
      %p186 = por %p184, %p185
      %s188 = sadd.s32 %s187, 1
      %p191 = scmp.eq.s32.totalorder %s17, 1
      %p192 = scmp.ne.s32.totalorder %s187, %s189
      %p193 = scmp.eq.s32.totalorder %s17, 0
      %p194 = por %p192, %p193
      %p195 = scmp.ne.s32.totalorder %s187, %s189
      %p196 = scmp.eq.s32.totalorder %s22, 1
      %p197 = por %p195, %p196
      %p198 = scmp.ne.s32.totalorder %s189, %s190
      %p199 = scmp.eq.s32.totalorder %s22, 0
      %p200 = por %p198, %p199
      %p201 = scmp.ne.s32.totalorder %s189, %s190
      %p202 = scmp.eq.s32.totalorder %s23, 1
      %p203 = por %p201, %p202
      %p205 = scmp.ne.s32.totalorder %s190, %s204
      %p206 = scmp.eq.s32.totalorder %s23, 0
      %p207 = por %p205, %p206
      %s209 = sadd.s32 %s208, 1
      %p212 = scmp.eq.s32.totalorder %s17, 1
      %p213 = scmp.ne.s32.totalorder %s208, %s210
      %p214 = scmp.eq.s32.totalorder %s17, 0
      %p215 = por %p213, %p214
      %p216 = scmp.ne.s32.totalorder %s208, %s210
      %p217 = scmp.eq.s32.totalorder %s22, 1
      %p218 = por %p216, %p217
      %p219 = scmp.ne.s32.totalorder %s210, %s211
      %p220 = scmp.eq.s32.totalorder %s22, 0
      %p221 = por %p219, %p220
      %p222 = scmp.ne.s32.totalorder %s210, %s211
      %p223 = scmp.eq.s32.totalorder %s23, 1
      %p224 = por %p222, %p223
      %p226 = scmp.ne.s32.totalorder %s211, %s225
      %p227 = scmp.eq.s32.totalorder %s23, 0
      %p228 = por %p226, %p227
      %s229 = ssub.s32 %s17, %s24
      %p230 = scmp.eq.s32.totalorder %s229, 0
      %s232 = sadd.s32 %s231, 1
      %s233 = scalar_select %p230, %s231, %s232
      %p236 = pneg %p230
      %p237 = scmp.eq.s32.totalorder %s17, 1
      %p238 = por %p236, %p237
      %p239 = scmp.ne.s32.totalorder %s231, %s234
      %p240 = scmp.eq.s32.totalorder %s17, 0
      %p241 = por %p239, %p240
      %p242 = scmp.ne.s32.totalorder %s231, %s234
      %p243 = scmp.eq.s32.totalorder %s22, 1
      %p244 = por %p242, %p243
      %p245 = scmp.ne.s32.totalorder %s234, %s235
      %p246 = scmp.eq.s32.totalorder %s22, 0
      %p247 = por %p245, %p246
      %p248 = scmp.ne.s32.totalorder %s234, %s235
      %p249 = scmp.eq.s32.totalorder %s23, 1
      %p250 = por %p248, %p249
      %p252 = scmp.ne.s32.totalorder %s235, %s251
      %p253 = scmp.eq.s32.totalorder %s23, 0
      %p254 = por %p252, %p253
      %s255 = ssub.s32 %s17, %s24
      %p256 = scmp.eq.s32.totalorder %s255, 0
      %s258 = sadd.s32 %s257, 1
      %s259 = scalar_select %p256, %s257, %s258
      %p262 = pneg %p256
      %p263 = scmp.eq.s32.totalorder %s17, 1
      %p264 = por %p262, %p263
      %p265 = scmp.ne.s32.totalorder %s257, %s260
      %p266 = scmp.eq.s32.totalorder %s17, 0
      %p267 = por %p265, %p266
      %p268 = scmp.ne.s32.totalorder %s257, %s260
      %p269 = scmp.eq.s32.totalorder %s22, 1
      %p270 = por %p268, %p269
      %p271 = scmp.ne.s32.totalorder %s260, %s261
      %p272 = scmp.eq.s32.totalorder %s22, 0
      %p273 = por %p271, %p272
      %p274 = scmp.ne.s32.totalorder %s260, %s261
      %p275 = scmp.eq.s32.totalorder %s23, 1
      %p276 = por %p274, %p275
      %p278 = scmp.ne.s32.totalorder %s261, %s277
      %p279 = scmp.eq.s32.totalorder %s23, 0
      %p280 = por %p278, %p279
      %p281 = scmp.le.s32.totalorder 1, %s17
      %p282 = scmp.lt.s32.totalorder %s17, 3
      %p283 = pnand %p281, %p282
      %p284 = pneg %p283
      // Predicated region
      $region9: #{_lambda_.1} parent=5 // pred_check
        _
      $region10: #{_lambda_.1} parent=5 // pred_check_branch
        %286 = sbr.rel (%p283) target = $region12
      $region11: #{_lambda_.1} parent=5 // pred_region
        %s287 = ssub.s32 %s17, 1
        // Predicated region
        $region13: #{_lambda_.1} parent=11 // pred_check
          %p288 = pneg %p116
        $region14: #{_lambda_.1} parent=11 // pred_check_branch
          %290 = sbr.rel (%p288) target = $region16
        $region15: #{_lambda_.1} parent=11 // pred_region
          _
        $region16: #{_lambda_.1} parent=11 // pred_fallthru
          _
        // Predicated region
        $region17: #{_lambda_.1} parent=11 // pred_check
          %p291 = pneg %p137
        $region18: #{_lambda_.1} parent=11 // pred_check_branch
          %293 = sbr.rel (%p291) target = $region20
        $region19: #{_lambda_.1} parent=11 // pred_region
          _
        $region20: #{_lambda_.1} parent=11 // pred_fallthru
          _
        // Predicated region
        $region21: #{_lambda_.1} parent=11 // pred_check
          %p294 = pneg %p158
        $region22: #{_lambda_.1} parent=11 // pred_check_branch
          %296 = sbr.rel (%p294) target = $region24
        $region23: #{_lambda_.1} parent=11 // pred_region
          _
        $region24: #{_lambda_.1} parent=11 // pred_fallthru
          _
        // Predicated region
        $region25: #{_lambda_.1} parent=11 // pred_check
          %p297 = pneg %p179
        $region26: #{_lambda_.1} parent=11 // pred_check_branch
          %299 = sbr.rel (%p297) target = $region28
        $region27: #{_lambda_.1} parent=11 // pred_region
          _
        $region28: #{_lambda_.1} parent=11 // pred_fallthru
          _
        // Predicated region
        $region29: #{_lambda_.1} parent=11 // pred_check
          %p300 = pneg %p200
        $region30: #{_lambda_.1} parent=11 // pred_check_branch
          %302 = sbr.rel (%p300) target = $region32
        $region31: #{_lambda_.1} parent=11 // pred_region
          _
        $region32: #{_lambda_.1} parent=11 // pred_fallthru
          _
        // Predicated region
        $region33: #{_lambda_.1} parent=11 // pred_check
          %p303 = pneg %p221
        $region34: #{_lambda_.1} parent=11 // pred_check_branch
          %305 = sbr.rel (%p303) target = $region36
        $region35: #{_lambda_.1} parent=11 // pred_region
          _
        $region36: #{_lambda_.1} parent=11 // pred_fallthru
          _
      $region12: #{_lambda_.1} parent=5 // pred_fallthru
        _
      %p306 = scmp.lt.s32.totalorder %s17, 2
      // Predicated region
      $region37: #{_lambda_.1} parent=5 // pred_check
        %p307 = pneg %p306
      $region38: #{_lambda_.1} parent=5 // pred_check_branch
        %309 = sbr.rel (%p307) target = $region40
      $region39: #{_lambda_.1} parent=5 // pred_region
        // Predicated region
        $region41: #{_lambda_.1} parent=39 // pred_check
          %p310 = pneg %p37
        $region42: #{_lambda_.1} parent=39 // pred_check_branch
          %312 = sbr.rel (%p310) target = $region44
        $region43: #{_lambda_.1} parent=39 // pred_region
          %s313 = sand.u32 %s27, 1
          %s314 = sand.u32 %s27, 1
          %s315 = smul.addr %s314, 48
          %s316 = scalar_lea.vmem [#allocation2], %s315
          %s317 = smul.u32 2, %s17
          %s318 = smul.addr %s317, 8
          %s319 = scalar_lea.vmem %s0, %s318
          // Predicated region
          $region45: #{_lambda_.1} parent=43 // pred_check
            _
          $region46: #{_lambda_.1} parent=43 // pred_check_branch
            %321 = sbr.rel (0) target = $region48
          $region47: #{_lambda_.1} parent=43 // pred_region
            // Predicated region
            $region49: #{_lambda_.1} parent=47 // pred_check
              _
            $region50: #{_lambda_.1} parent=47 // pred_check_branch
              %323 = sbr.rel (0) target = $region52
            $region51: #{_lambda_.1} parent=47 // pred_region
              loop: start=0, step=1, limit=1
              $region53: #{_lambda_.1} parent=51 // loop_pre_header
                _
              $region54: #{_lambda_.1} parent=51 // loop_header
                %s325 = sphi 0, %s329
                %p326 = scmp.ge.s32.totalorder %s325, 1
                %s330 = sphi %s319, %s319
                %s331 = sphi %s316, %s316
              $region55: #{_lambda_.1} parent=51 // loop_header_branch
                %328 = sbr.rel (%p326) target = $region59
              $region56: #{_lambda_.1} parent=51 // loop_body
                %v332 = vld [vmem:[%s330] sm:$0xff]
                %333 = vst [vmem:[%s331] sm:$0xff] %v332
                %v334 = vld [vmem:[%s330 + $0x8] sm:$0xff]
                %335 = vst [vmem:[%s331 + $0x8] sm:$0xff] %v334
                %v336 = vld [vmem:[%s330 + $0x20] sm:$0xff]
                %337 = vst [vmem:[%s331 + $0x10] sm:$0xff] %v336
                %v338 = vld [vmem:[%s330 + $0x28] sm:$0xff]
                %339 = vst [vmem:[%s331 + $0x18] sm:$0xff] %v338
                %v340 = vld [vmem:[%s330 + $0x40] sm:$0xff]
                %341 = vst [vmem:[%s331 + $0x20] sm:$0xff] %v340
                %v342 = vld [vmem:[%s330 + $0x48] sm:$0xff]
                %343 = vst [vmem:[%s331 + $0x28] sm:$0xff] %v342
              $region57: #{_lambda_.1} parent=51 // loop_footer
                %s329 = sadd.s32 1, %s325
              $region58: #{_lambda_.1} parent=51 // loop_footer_branch
                %324 = sbr.rel target = $region54
              $region59: #{_lambda_.1} parent=51 // loop_exit
                _
            $region52: #{_lambda_.1} parent=47 // pred_fallthru
              _
            // Predicated region
            $region60: #{_lambda_.1} parent=47 // pred_check
              _
            $region61: #{_lambda_.1} parent=47 // pred_check_branch
              %345 = sbr.rel target = $region63
            $region62: #{_lambda_.1} parent=47 // pred_region
              _
            $region63: #{_lambda_.1} parent=47 // pred_fallthru
              _
          $region48: #{_lambda_.1} parent=43 // pred_fallthru
            _
          %346 = vnop
        $region44: #{_lambda_.1} parent=39 // pred_fallthru
          _
        // Predicated region
        $region64: #{_lambda_.1} parent=39 // pred_check
          %p347 = pneg %p63
        $region65: #{_lambda_.1} parent=39 // pred_check_branch
          %349 = sbr.rel (%p347) target = $region67
        $region66: #{_lambda_.1} parent=39 // pred_region
          %s350 = smul.u32 2, %s17
          %p351 = scmp.lt.s32.totalorder %s350, 3
          %s352 = scalar_select %p351, %s350, 3
          %s353 = smul.addr %s352, 8
          %s354 = scalar_lea.vmem %s1, %s353
          %s355 = smul.u32 2, %s17
        $region67: #{_lambda_.1} parent=39 // pred_fallthru
          _
        // Predicated region
        $region68: #{_lambda_.1} parent=39 // pred_check
          %p356 = pneg %p89
        $region69: #{_lambda_.1} parent=39 // pred_check_branch
          %358 = sbr.rel (%p356) target = $region71
        $region70: #{_lambda_.1} parent=39 // pred_region
          %s359 = smul.u32 2, %s17
          %p360 = scmp.lt.s32.totalorder %s359, 3
          %s361 = scalar_select %p360, %s359, 3
          %s362 = smul.addr %s361, 4
          %s363 = scalar_lea.vmem %s2, %s362
          %s364 = smul.u32 2, %s17
        $region71: #{_lambda_.1} parent=39 // pred_fallthru
          _
      $region40: #{_lambda_.1} parent=5 // pred_fallthru
        _
      %p365 = scmp.le.s32.totalorder 1, %s17
      %p366 = scmp.lt.s32.totalorder %s17, 3
      %p367 = pnand %p365, %p366
      %p368 = pneg %p367
      // Predicated region
      $region72: #{_lambda_.1} parent=5 // pred_check
        _
      $region73: #{_lambda_.1} parent=5 // pred_check_branch
        %370 = sbr.rel (%p367) target = $region75
      $region74: #{_lambda_.1} parent=5 // pred_region
        %s371 = ssub.s32 %s17, 1
        %s372 = sand.u32 %s30, 1
        %s373 = sand.u32 %s30, 1
        %s374 = smul.addr %s373, 48
        %s375 = scalar_lea.vmem [#allocation2], %s374
        // Predicated region
        $region76: #{_lambda_.1} parent=74 // pred_check
          %p376 = pneg %p43
        $region77: #{_lambda_.1} parent=74 // pred_check_branch
          %378 = sbr.rel (%p376) target = $region79
        $region78: #{_lambda_.1} parent=74 // pred_region
          _
        $region79: #{_lambda_.1} parent=74 // pred_fallthru
          _
        %s379 = sand.u32 %s30, 1
        %s380 = sand.u32 %s30, 1
        %s381 = smul.addr %s380, 48
        %s382 = scalar_lea.vmem [#allocation2], %s381
        %p383 = pneg %p43
        %p384 = pneg %p40
        %s385 = smul.u32 2, %s22
        %p386 = scmp.lt.s32.totalorder %s385, 3
        %s387 = scalar_select %p386, %s385, 3
        %s388 = smul.addr %s387, 8
        %s389 = scalar_lea.vmem %s1, %s388
        %p390 = pneg %p69
        %p391 = pneg %p66
        %s392 = smul.u32 2, %s22
        %p393 = scmp.lt.s32.totalorder %s392, 3
        %s394 = scalar_select %p393, %s392, 3
        %s395 = smul.addr %s394, 4
        %s396 = scalar_lea.vmem %s2, %s395
        %p397 = pneg %p95
        %p398 = pneg %p92
        %p399 = pneg %p116
        %p400 = pneg %p113
        %p401 = pneg %p137
        %p402 = pneg %p134
        %p403 = pneg %p158
        %p404 = pneg %p155
        %p405 = pneg %p179
        %p406 = pneg %p176
        %p407 = pneg %p200
        %p408 = pneg %p197
        %p409 = pneg %p221
        %p410 = pneg %p218
        %p411 = pneg %p247
        %p412 = pneg %p244
        %s413 = smul.u32 2, %s22
        %p414 = scmp.lt.s32.totalorder %s413, 3
        %s415 = scalar_select %p414, %s413, 3
        %s416 = smul.addr %s415, 4
        %s417 = scalar_lea.vmem %s9, %s416
        %p418 = pneg %p273
        %p419 = pneg %p270
        %s420 = smul.u32 2, %s22
        %p421 = scmp.lt.s32.totalorder %s420, 3
        %s422 = scalar_select %p421, %s420, 3
        %s423 = smul.addr %s422, 4
        %s424 = scalar_lea.vmem %s10, %s423
        %s425 = smul.u32 2, %s22
        %s426 = smul.u32 2, %s22
        %p427 = scmp.lt.s32.totalorder %s426, 3
        %s428 = scalar_select %p427, %s426, 3
        %s429 = smul.addr %s428, 8
        %s430 = scalar_lea.vmem %s1, %s429
        %s431 = smul.u32 2, %s22
        %s432 = smul.u32 2, %s22
        %p433 = scmp.lt.s32.totalorder %s432, 3
        %s434 = scalar_select %p433, %s432, 3
        %s435 = smul.addr %s434, 4
        %s436 = scalar_lea.vmem %s2, %s435
        %s437 = smul.u32 2, %s22
        %s438 = smul.u32 2, %s22
        %p439 = scmp.lt.s32.totalorder %s438, 3
        %s440 = scalar_select %p439, %s438, 3
        %s441 = smul.addr %s440, 4
        %s442 = scalar_lea.vmem %s9, %s441
        %s443 = smul.u32 2, %s22
        %s444 = smul.u32 2, %s22
        %p445 = scmp.lt.s32.totalorder %s444, 3
        %s446 = scalar_select %p445, %s444, 3
        %s447 = smul.addr %s446, 4
        %s448 = scalar_lea.vmem %s10, %s447
        %s449 = smul.u32 2, %s22
        %v450 = vld [vmem:[%s3] sm:$0xff]
        %v451 = vld [vmem:[%s3 + $0x8] sm:$0xff]
        %v452 = vld [vmem:[%s375] sm:$0xff]
        %v453 = vld [vmem:[%s375 + $0x8] sm:$0xff]
        %v454 = vld [vmem:[%s375 + $0x10] sm:$0xff]
        %v455 = vld [vmem:[%s375 + $0x18] sm:$0xff]
        %v456 = vld [vmem:[%s375 + $0x20] sm:$0xff]
        %v457 = vld [vmem:[%s375 + $0x28] sm:$0xff]
        %v458 = vld [vmem:[%s4] sm:$0xff]
        %v459 = vld [vmem:[%s4 + $0x8] sm:$0xff]
        %461 = vset.pattern.permute.xlu0 0
        %462 = vperm.xlu0 %461, %v458
        %v463 = vpop.permute.xlu0 %462
        %466 = vset.pattern.permute.xlu0 0
        %467 = vperm.xlu0 %466, %v459
        %v468 = vpop.permute.xlu0 %467
        %vm470 = vcmask 195584
        %v472 = vsel %vm470, %v450, 0
        %v475 = vsel %vm470, %v451, 0
        %477 = vmatprep.subr.mxu0 %v453
        %478 = vmatpush1.msra.mxu0 %v452
        %479 = vmatprep.subr.mxu0 %v455
        %480 = vmatpush1.msra.mxu0 %v454
        %481 = vmatprep.subr.mxu0 %v457
        %482 = vmatpush1.msra.mxu0 %v456
        %483 = vmatprep.subr.mxu0 0.0
        %484 = vmatpush1.msra.mxu0 0.0
        %485 = vmatprep.subr.mxu0 0.0
        %486 = vmatpush1.msra.mxu0 0.0
        %487 = vmatprep.subr.mxu0 0.0
        %488 = vmatpush1.msra.mxu0 0.0
        %489 = vmatprep.subr.mxu0 0.0
        %490 = vmatpush1.msra.mxu0 0.0
        %491 = vmatprep.subr.mxu0 0.0
        %492 = vmatpush1.msra.mxu0 0.0
        %493 = vmatprep.subr.mxu0 0.0
        %494 = vmatpush1.msra.mxu0 0.0
        %495 = vmatprep.subr.mxu0 0.0
        %496 = vmatpush1.msra.mxu0 0.0
        %497 = vmatprep.subr.mxu0 0.0
        %498 = vmatpush1.msra.mxu0 0.0
        %499 = vmatprep.subr.mxu0 0.0
        %500 = vmatpush1.msra.mxu0 0.0
        %501 = vmatprep.subr.mxu0 0.0
        %502 = vmatpush1.msra.mxu0 0.0
        %503 = vmatprep.subr.mxu0 0.0
        %504 = vmatpush1.msra.mxu0 0.0
        %505 = vmatprep.subr.mxu0 0.0
        %506 = vmatpush1.msra.mxu0 0.0
        %507 = vmatprep.subr.mxu0 0.0
        %508 = vmatpush1.msra.mxu0 0.0
        %509 = vmatprep.subr.mxu0 0.0
        %510 = vmatpush1.msra.mxu0 0.0
        %511 = vmatprep.subr.mxu0 0.0
        %512 = vmatpush1.msra.mxu0 0.0
        %513 = vmatprep.subr.mxu0 0.0
        %514 = vmatpush1.msra.mxu0 0.0
        %515 = vmatprep.subr.mxu0 0.0
        %516 = vmatpush1.msra.mxu0 0.0
        %517 = vmatprep.subr.mxu0 0.0
        %518 = vmatpush1.msra.mxu0 0.0
        %519 = vmatprep.subr.mxu0 0.0
        %520 = vmatpush1.msra.mxu0 0.0
        %521 = vmatprep.subr.mxu0 0.0
        %522 = vmatpush1.msra.mxu0 0.0
        %523 = vmatprep.subr.mxu0 0.0
        %524 = vmatpush1.msra.mxu0 0.0
        %525 = vmatprep.subr.mxu0 0.0
        %526 = vmatpush1.msra.mxu0 0.0
        %527 = vmatprep.subr.mxu0 0.0
        %528 = vmatpush1.msra.mxu0 0.0
        %529 = vmatprep.subr.mxu0 0.0
        %530 = vmatpush1.msra.mxu0 0.0
        %531 = vmatprep.subr.mxu0 0.0
        %532 = vmatpush1.msra.mxu0 0.0
        %533 = vmatprep.subr.mxu0 0.0
        %534 = vmatpush1.msra.mxu0 0.0
        %535 = vmatprep.subr.mxu0 0.0
        %536 = vmatpush1.msra.mxu0 0.0
        %537 = vmatprep.subr.mxu0 0.0
        %538 = vmatpush1.msra.mxu0 0.0
        %539 = vmatprep.subr.mxu0 0.0
        %540 = vmatpush1.msra.mxu0 0.0
        %541 = vmatprep.mubr.f32.mxu0 0.0
        %542 = vmatmul.mubr.f32.gmra.mrb[0].mxu0 %v472
        %v543 = vpop.f32.mrb[0].mxu0
        %v544 = vadd.f32 %v463, %v543
        %v545 = vpop.f32.mrb[0].mxu0
        %v546 = vadd.f32 %v463, %v545
        %547 = vmatprep.mubr.f32.mxu0 0.0
        %548 = vmatmul.mubr.f32.gmra.mrb[0].mxu0 %v475
        %v549 = vpop.f32.mrb[0].mxu0
        %v550 = vadd.f32 %v468, %v549
        %v551 = vpop.f32.mrb[0].mxu0
        %v552 = vadd.f32 %v468, %v551
        %553 = vdwg.mxu0
        %v554 = vtanh.pop %v544
        %v555 = vtanh.pop %v546
        %v556 = vxor.u32 %v544, 2147483648
        %v557 = vxor.u32 %v546, 2147483648
        %v558 = vmul.f32 %v556, 1.442695
        %v559 = vpow.pop %v558
        %v560 = vmul.f32 %v557, 1.442695
        %v561 = vpow.pop %v560
        %v562 = vadd.f32 %v559, 1.0
        %v563 = vadd.f32 %v561, 1.0
        %v564 = vrcp.pop %v562
        %v565 = vmul.f32 1.0, %v564
        %v566 = vrcp.pop %v563
        %v567 = vmul.f32 1.0, %v566
        %v570 = vrot.slane %v565, 4
        %v571 = vrot.slane %v567, 4
        %v574 = vmul.f32 %v554, %v570
        %v575 = vmul.f32 %v555, %v571
        %v578 = vcombine.low %v574, %v575
        %580 = vst [vmem:[%s442] sm:$0xff] %v578
        %v581 = vld [vmem:[%s5] sm:$0xff]
        %v582 = vld [vmem:[%s430] sm:$0xff]
        %v583 = vld [vmem:[%s430 + $0x8] sm:$0xff]
        %v584 = vld [vmem:[%s6] sm:$0xff]
        %586 = vset.pattern.permute.xlu0 0
        %587 = vperm.xlu0 %586, %v584
        %v588 = vpop.permute.xlu0 %587
        %vm590 = vcmask 64512
        %v592 = vsel %vm590, %v581, 0
        %594 = vmatprep.subr.mxu0 %v583
        %595 = vmatpush1.msra.mxu0 %v582
        %596 = vmatprep.subr.mxu0 0.0
        %597 = vmatpush1.msra.mxu0 0.0
        %598 = vmatprep.subr.mxu0 0.0
        %599 = vmatpush1.msra.mxu0 0.0
        %600 = vmatprep.subr.mxu0 0.0
        %601 = vmatpush1.msra.mxu0 0.0
        %602 = vmatprep.subr.mxu0 0.0
        %603 = vmatpush1.msra.mxu0 0.0
        %604 = vmatprep.subr.mxu0 0.0
        %605 = vmatpush1.msra.mxu0 0.0
        %606 = vmatprep.subr.mxu0 0.0
        %607 = vmatpush1.msra.mxu0 0.0
        %608 = vmatprep.subr.mxu0 0.0
        %609 = vmatpush1.msra.mxu0 0.0
        %610 = vmatprep.subr.mxu0 0.0
        %611 = vmatpush1.msra.mxu0 0.0
        %612 = vmatprep.subr.mxu0 0.0
        %613 = vmatpush1.msra.mxu0 0.0
        %614 = vmatprep.subr.mxu0 0.0
        %615 = vmatpush1.msra.mxu0 0.0
        %616 = vmatprep.subr.mxu0 0.0
        %617 = vmatpush1.msra.mxu0 0.0
        %618 = vmatprep.subr.mxu0 0.0
        %619 = vmatpush1.msra.mxu0 0.0
        %620 = vmatprep.subr.mxu0 0.0
        %621 = vmatpush1.msra.mxu0 0.0
        %622 = vmatprep.subr.mxu0 0.0
        %623 = vmatpush1.msra.mxu0 0.0
        %624 = vmatprep.subr.mxu0 0.0
        %625 = vmatpush1.msra.mxu0 0.0
        %626 = vmatprep.subr.mxu0 0.0
        %627 = vmatpush1.msra.mxu0 0.0
        %628 = vmatprep.subr.mxu0 0.0
        %629 = vmatpush1.msra.mxu0 0.0
        %630 = vmatprep.subr.mxu0 0.0
        %631 = vmatpush1.msra.mxu0 0.0
        %632 = vmatprep.subr.mxu0 0.0
        %633 = vmatpush1.msra.mxu0 0.0
        %634 = vmatprep.subr.mxu0 0.0
        %635 = vmatpush1.msra.mxu0 0.0
        %636 = vmatprep.subr.mxu0 0.0
        %637 = vmatpush1.msra.mxu0 0.0
        %638 = vmatprep.subr.mxu0 0.0
        %639 = vmatpush1.msra.mxu0 0.0
        %640 = vmatprep.subr.mxu0 0.0
        %641 = vmatpush1.msra.mxu0 0.0
        %642 = vmatprep.subr.mxu0 0.0
        %643 = vmatpush1.msra.mxu0 0.0
        %644 = vmatprep.subr.mxu0 0.0
        %645 = vmatpush1.msra.mxu0 0.0
        %646 = vmatprep.subr.mxu0 0.0
        %647 = vmatpush1.msra.mxu0 0.0
        %648 = vmatprep.subr.mxu0 0.0
        %649 = vmatpush1.msra.mxu0 0.0
        %650 = vmatprep.subr.mxu0 0.0
        %651 = vmatpush1.msra.mxu0 0.0
        %652 = vmatprep.subr.mxu0 0.0
        %653 = vmatpush1.msra.mxu0 0.0
        %654 = vmatprep.subr.mxu0 0.0
        %655 = vmatpush1.msra.mxu0 0.0
        %656 = vmatprep.subr.mxu0 0.0
        %657 = vmatpush1.msra.mxu0 0.0
        %658 = vmatprep.mubr.f32.mxu0 0.0
        %659 = vmatmul.mubr.f32.gmra.mrb[0].mxu0 %v592
        %v660 = vpop.f32.mrb[0].mxu0
        %v661 = vadd.f32 %v588, %v660
        %v662 = vpop.f32.mrb[0].mxu0
        %v663 = vadd.f32 %v588, %v662
        %664 = vdwg.mxu0
        %v665 = vadd.f32 %v661, %v550
        %v666 = vadd.f32 %v663, %v552
        %v667 = vtanh.pop %v665
        %v668 = vtanh.pop %v666
        %v669 = vxor.u32 %v665, 2147483648
        %v670 = vxor.u32 %v666, 2147483648
        %v671 = vmul.f32 %v669, 1.442695
        %v672 = vpow.pop %v671
        %v673 = vmul.f32 %v670, 1.442695
        %v674 = vpow.pop %v673
        %v675 = vadd.f32 %v672, 1.0
        %v676 = vadd.f32 %v674, 1.0
        %v677 = vrcp.pop %v675
        %v678 = vmul.f32 1.0, %v677
        %v679 = vrcp.pop %v676
        %v680 = vmul.f32 1.0, %v679
        %v683 = vrot.slane %v678, 4
        %v684 = vrot.slane %v680, 4
        %v687 = vmul.f32 %v667, %v683
        %v688 = vmul.f32 %v668, %v684
        %v689 = vld [vmem:[%s7] sm:$0xf]
        %v690 = vld [vmem:[%s8] sm:$0xf]
        %692 = vset.pattern.permute.xlu0 0
        %693 = vperm.xlu0 %692, %v690
        %v694 = vpop.permute.xlu0 %693
        %vm696 = vcmask 31744
        %v698 = vsel %vm696, %v689, 0
        %vm700 = vcmask 1043456
        %v702 = vsel %vm700, %v687, 0
        %v705 = vsel %vm700, %v688, 0
        %707 = vmatprep.subr.mxu0 %v705
        %708 = vmatpush1.msra.mxu0 %v702
        %709 = vmatprep.subr.mxu0 0.0
        %710 = vmatpush1.msra.mxu0 0.0
        %711 = vmatprep.subr.mxu0 0.0
        %712 = vmatpush1.msra.mxu0 0.0
        %713 = vmatprep.subr.mxu0 0.0
        %714 = vmatpush1.msra.mxu0 0.0
        %715 = vmatprep.subr.mxu0 0.0
        %716 = vmatpush1.msra.mxu0 0.0
        %717 = vmatprep.subr.mxu0 0.0
        %718 = vmatpush1.msra.mxu0 0.0
        %719 = vmatprep.subr.mxu0 0.0
        %720 = vmatpush1.msra.mxu0 0.0
        %721 = vmatprep.subr.mxu0 0.0
        %722 = vmatpush1.msra.mxu0 0.0
        %723 = vmatprep.subr.mxu0 0.0
        %724 = vmatpush1.msra.mxu0 0.0
        %725 = vmatprep.subr.mxu0 0.0
        %726 = vmatpush1.msra.mxu0 0.0
        %727 = vmatprep.subr.mxu0 0.0
        %728 = vmatpush1.msra.mxu0 0.0
        %729 = vmatprep.subr.mxu0 0.0
        %730 = vmatpush1.msra.mxu0 0.0
        %731 = vmatprep.subr.mxu0 0.0
        %732 = vmatpush1.msra.mxu0 0.0
        %733 = vmatprep.subr.mxu0 0.0
        %734 = vmatpush1.msra.mxu0 0.0
        %735 = vmatprep.subr.mxu0 0.0
        %736 = vmatpush1.msra.mxu0 0.0
        %737 = vmatprep.subr.mxu0 0.0
        %738 = vmatpush1.msra.mxu0 0.0
        %739 = vmatprep.subr.mxu0 0.0
        %740 = vmatpush1.msra.mxu0 0.0
        %741 = vmatprep.subr.mxu0 0.0
        %742 = vmatpush1.msra.mxu0 0.0
        %743 = vmatprep.subr.mxu0 0.0
        %744 = vmatpush1.msra.mxu0 0.0
        %745 = vmatprep.subr.mxu0 0.0
        %746 = vmatpush1.msra.mxu0 0.0
        %747 = vmatprep.subr.mxu0 0.0
        %748 = vmatpush1.msra.mxu0 0.0
        %749 = vmatprep.subr.mxu0 0.0
        %750 = vmatpush1.msra.mxu0 0.0
        %751 = vmatprep.subr.mxu0 0.0
        %752 = vmatpush1.msra.mxu0 0.0
        %753 = vmatprep.subr.mxu0 0.0
        %754 = vmatpush1.msra.mxu0 0.0
        %755 = vmatprep.subr.mxu0 0.0
        %756 = vmatpush1.msra.mxu0 0.0
        %757 = vmatprep.subr.mxu0 0.0
        %758 = vmatpush1.msra.mxu0 0.0
        %759 = vmatprep.subr.mxu0 0.0
        %760 = vmatpush1.msra.mxu0 0.0
        %761 = vmatprep.subr.mxu0 0.0
        %762 = vmatpush1.msra.mxu0 0.0
        %763 = vmatprep.subr.mxu0 0.0
        %764 = vmatpush1.msra.mxu0 0.0
        %765 = vmatprep.subr.mxu0 0.0
        %766 = vmatpush1.msra.mxu0 0.0
        %767 = vmatprep.subr.mxu0 0.0
        %768 = vmatpush1.msra.mxu0 0.0
        %769 = vmatprep.subr.mxu0 0.0
        %770 = vmatpush1.msra.mxu0 0.0
        %771 = vmatprep.mubr.f32.mxu0 0.0
        %772 = vmatmul.mubr.f32.gmra.mrb[0].mxu0 %v698
        %v773 = vpop.f32.mrb[0].mxu0
        %v774 = vadd.f32 %v694, %v773
        %v775 = vpop.f32.mrb[0].mxu0
        %v776 = vadd.f32 %v694, %v775
        %777 = vdwg.mxu0
        %v778 = vld [vmem:[%s436] sm:$0xff]
        %v780 = vcombine.high %v778, %v778
        %v782 = vadd.f32 %v774, %v778
        %v783 = vadd.f32 %v776, %v780
        %v786 = vcombine.low %v782, %v783
        %788 = vst [vmem:[%s448] sm:$0xff] %v786
        %s789 = smul.u32 2, %s22
        %p790 = scmp.lt.s32.totalorder %s789, 3
        %s791 = scalar_select %p790, %s789, 3
        %s792 = smul.addr %s791, 4
        %s793 = scalar_lea.vmem %s9, %s792
        %s794 = smul.u32 2, %s22
        %p795 = scmp.lt.s32.totalorder %s794, 3
        %s796 = scalar_select %p795, %s794, 3
        %s797 = smul.addr %s796, 4
        %s798 = scalar_lea.vmem %s10, %s797
        // Predicated region
        $region80: #{_lambda_.1} parent=74 // pred_check
          %p799 = pneg %p244
        $region81: #{_lambda_.1} parent=74 // pred_check_branch
          %801 = sbr.rel (%p799) target = $region83
        $region82: #{_lambda_.1} parent=74 // pred_region
          %s802 = smul.u32 2, %s22
        $region83: #{_lambda_.1} parent=74 // pred_fallthru
          _
        // Predicated region
        $region84: #{_lambda_.1} parent=74 // pred_check
          %p803 = pneg %p270
        $region85: #{_lambda_.1} parent=74 // pred_check_branch
          %805 = sbr.rel (%p803) target = $region87
        $region86: #{_lambda_.1} parent=74 // pred_region
          %s806 = smul.u32 2, %s22
        $region87: #{_lambda_.1} parent=74 // pred_fallthru
          _
      $region75: #{_lambda_.1} parent=5 // pred_fallthru
        _
      %p807 = scmp.le.s32.totalorder 2, %s17
      // Predicated region
      $region88: #{_lambda_.1} parent=5 // pred_check
        %p808 = pneg %p807
      $region89: #{_lambda_.1} parent=5 // pred_check_branch
        %810 = sbr.rel (%p808) target = $region91
      $region90: #{_lambda_.1} parent=5 // pred_region
        %s811 = ssub.s32 %s17, 2
        // Predicated region
        $region92: #{_lambda_.1} parent=90 // pred_check
          %p812 = pneg %p250
        $region93: #{_lambda_.1} parent=90 // pred_check_branch
          %814 = sbr.rel (%p812) target = $region95
        $region94: #{_lambda_.1} parent=90 // pred_region
          %s815 = smul.u32 2, %s23
          %p816 = scmp.lt.s32.totalorder %s815, 3
          %s817 = scalar_select %p816, %s815, 3
          %s818 = smul.addr %s817, 4
          %s819 = scalar_lea.vmem %s9, %s818
        $region95: #{_lambda_.1} parent=90 // pred_fallthru
          _
        // Predicated region
        $region96: #{_lambda_.1} parent=90 // pred_check
          %p820 = pneg %p276
        $region97: #{_lambda_.1} parent=90 // pred_check_branch
          %822 = sbr.rel (%p820) target = $region99
        $region98: #{_lambda_.1} parent=90 // pred_region
          %s823 = smul.u32 2, %s23
          %p824 = scmp.lt.s32.totalorder %s823, 3
          %s825 = scalar_select %p824, %s823, 3
          %s826 = smul.addr %s825, 4
          %s827 = scalar_lea.vmem %s10, %s826
        $region99: #{_lambda_.1} parent=90 // pred_fallthru
          _
      $region91: #{_lambda_.1} parent=5 // pred_fallthru
        _
    $region6: #{_lambda_.1} parent=1 // loop_footer
      %s21 = sadd.s32 1, %s17
    $region7: #{_lambda_.1} parent=1 // loop_footer_branch
      %16 = sbr.rel target = $region3
    $region8: #{_lambda_.1} parent=1 // loop_exit
      _

</llo_original>
